<compile_context>
chip_gen: v7x
topology: tpu7x:2x2x1
jax: 0.10.0
libtpu: 0.0.40
codegen_flags: <defaults>
</compile_context>

<pallas_src>
import jax
import jax.numpy as jnp
from jax.experimental import pallas as pl
from jax.experimental.pallas import tpu as pltpu


_INV_SQRT2 = 0.7071067811865476
_MIB = 1024 * 1024


def _round_up(x, m):
    return ((x + m - 1) // m) * m


def _adapter_kernel(x_ref, wd_ref, bd_ref, wu_ref, bu_ref, o_ref):
    # x_ref:  (TM, H)     token tile (last grid step may be ragged; masked)
    # wd_ref: (H, A_pad)  down-projection weight, (in, out) layout
    # bd_ref: (1, A_pad)  down-projection bias (f32)
    # wu_ref: (A_pad, H)  up-projection weight, (in, out) layout
    # bu_ref: (1, H)      up-projection bias (f32)
    # o_ref:  (TM, H)     output tile
    x = x_ref[...]

    # Down projection on the MXU, f32 accumulation. The lhs is cast to the
    # (prepared) weight dtype, which is a no-op unless matmul_dtype was set.
    y = jnp.dot(x.astype(wd_ref.dtype), wd_ref[...],
                preferred_element_type=jnp.float32)
    y = y + bd_ref[...]

    # Exact (erf) GELU in f32 — matches transformers ACT2FN["gelu"].
    # TODO(synk): config.adapter_act is configurable in the module; only the
    # default exact-erf "gelu" is implemented here.
    a = 0.5 * y * (1.0 + jax.lax.erf(y * jnp.float32(_INV_SQRT2)))

    # Up projection on the MXU, f32 accumulation.
    z = jnp.dot(a.astype(wu_ref.dtype), wu_ref[...],
                preferred_element_type=jnp.float32)
    z = z + bu_ref[...]

    # Residual add in f32, cast back to the I/O dtype.
    o_ref[...] = (x.astype(jnp.float32) + z).astype(o_ref.dtype)


def _device_info():
    """Best-effort (vmem_capacity_bytes, num_tensorcores) of the default device."""
    vmem_cap = 0
    num_cores = 1
    try:
        info = pltpu.get_tpu_info()
        vmem_cap = int(getattr(info, "vmem_capacity_bytes", 0) or 0)
    except Exception:
        pass
    try:
        kind = jax.devices()[0].device_kind.lower()
        # v7x has 2 TensorCores per device; v4/v5p expose a 2-TC megacore.
        if ("7" in kind) or ("v4" in kind) or ("v5p" in kind):
            num_cores = 2
    except Exception:
        pass
    return vmem_cap, num_cores


def prepare_adapter_params(w_down, b_down, w_up, b_up, *, dtype=None,
                           matmul_dtype=None):
    """One-time weight preparation (hoist out of the per-call hot path).

    w_down: (H, A) == nn.Linear(H, A).weight.T     b_down: (A,)
    w_up:   (A, H) == nn.Linear(A, H).weight.T     b_up:   (H,)

    Pads the adapter dim A of the weights up to 128 lanes with exact zeros
    (GELU(0)=0 and zero rows of w_up contribute nothing, so results are
    unchanged). `matmul_dtype=jnp.bfloat16` enables bf16-operand / f32-accum
    matmuls (useful on v5e when A >= 128 and the model dtype is f32).
    """
    H, A = w_down.shape
    assert w_up.shape == (A, H)
    wdt = matmul_dtype or dtype or w_down.dtype
    A_pad = _round_up(A, 128)

    wd = jnp.pad(w_down.astype(wdt), ((0, 0), (0, A_pad - A)))
    wu = jnp.pad(w_up.astype(wdt), ((0, A_pad - A), (0, 0)))
    bd = jnp.pad(b_down.astype(jnp.float32), (0, A_pad - A)).reshape(1, A_pad)
    bu = b_up.astype(jnp.float32).reshape(1, H)
    return wd, bd, wu, bu


def deberta_adapter_prepared(hidden_states, wd, bd, wu, bu, *,
                             tile_m=None, vmem_limit_bytes=None):
    """Fused adapter forward with pre-prepared (padded/cast) parameters.

    hidden_states: (B, S, H); returns (B, S, H) in hidden_states.dtype.
    """
    B, S, H = hidden_states.shape
    M = B * S
    dtype = hidden_states.dtype
    A_pad = wd.shape[1]
    assert wd.shape[0] == H and wu.shape == (A_pad, H)
    assert bd.shape == (1, A_pad) and bu.shape == (1, H)

    itemsize = jnp.dtype(dtype).itemsize
    # Dtype-aware sublane multiple: 8 rows (f32), 16 (bf16), 32 (int8/fp8).
    sub = max(8, 32 // max(itemsize, 1))

    vmem_cap, num_cores = _device_info()
    big_vmem = vmem_cap >= 100 * _MIB          # v5e/v6e: 128 MiB; v7x: 64 MiB
    if vmem_limit_bytes is None:
        vmem_limit_bytes = (96 if big_vmem else 48) * _MIB
    if tile_m is None:
        tile_m = 2048 if big_vmem else 1024

    # Cap the token tile so the x + out double buffers (2 streams x 2 bufs)
    # use at most ~half the VMEM limit, leaving room for resident weights and
    # the f32 intermediates.
    budget = int(vmem_limit_bytes) // 2
    max_tile = max(budget // (4 * H * itemsize), sub)
    tile_m = int(max(min(tile_m, max_tile), sub))

    n_tiles = pl.cdiv(M, tile_m)
    if num_cores > 1 and M > sub:
        # Balance tile counts across TensorCores (v7x / megacore parts).
        n_tiles = _round_up(max(n_tiles, num_cores), num_cores)
    tile = _round_up(pl.cdiv(M, n_tiles), sub)
    n_tiles = pl.cdiv(M, tile)                 # safety recompute

    x2d = hidden_states.reshape(M, H)          # pure reshape, no copy / pad

    out2d = pl.pallas_call(
        _adapter_kernel,
        out_shape=jax.ShapeDtypeStruct((M, H), dtype),
        grid_spec=pltpu.PrefetchScalarGridSpec(
            num_scalar_prefetch=0,
            grid=(n_tiles,),
            in_specs=[
                pl.BlockSpec((tile, H), lambda i: (i, 0)),     # x tile (streamed)
                pl.BlockSpec((H, A_pad), lambda i: (0, 0)),    # W_down (resident)
                pl.BlockSpec((1, A_pad), lambda i: (0, 0)),    # b_down (resident)
                pl.BlockSpec((A_pad, H), lambda i: (0, 0)),    # W_up   (resident)
                pl.BlockSpec((1, H), lambda i: (0, 0)),        # b_up   (resident)
            ],
            out_specs=pl.BlockSpec((tile, H), lambda i: (i, 0)),
        ),
        compiler_params=pltpu.CompilerParams(
            dimension_semantics=("parallel",),
            vmem_limit_bytes=int(vmem_limit_bytes),
        ),
    )(x2d, wd, bd, wu, bu)

    return out2d.reshape(B, S, H)


def deberta_adapter(hidden_states, w_down, b_down, w_up, b_up, **kwargs):
    """Convenience wrapper: prepares params per call (prefer hoisting
    prepare_adapter_params() to parameter-load time in real use)."""
    params = prepare_adapter_params(w_down, b_down, w_up, b_up,
                                    dtype=hidden_states.dtype)
    return deberta_adapter_prepared(hidden_states, *params, **kwargs)


def _reference(hidden_states, w_down, b_down, w_up, b_up):
    B, S, H = hidden_states.shape
    x2d = hidden_states.reshape(-1, H)
    y = x2d @ w_down + b_down
    a = 0.5 * y * (1.0 + jax.lax.erf(y / jnp.sqrt(2.0)))
    return (x2d + (a @ w_up + b_up)).reshape(B, S, H)


if __name__ == "__main__":
    # Small shapes consistent with the adapter module:
    #   batch=2, seq=8, hidden_size=32, adapter_size=16
    B, S, H, A = 2, 8, 32, 16

    key = jax.random.PRNGKey(0)
    k_x, k_wd, k_bd, k_wu, k_bu = jax.random.split(key, 5)

    hidden_states = jax.random.normal(k_x, (B, S, H), dtype=jnp.float32)

    # nn.Linear weights stored in (in, out) layout == torch weight.T.
    # (Module init is normal(std)/zero-bias; non-zero biases used here to
    # exercise the bias path.)
    w_down = jax.random.normal(k_wd, (H, A), dtype=jnp.float32) * 0.02
    b_down = jax.random.normal(k_bd, (A,), dtype=jnp.float32) * 0.02
    w_up = jax.random.normal(k_wu, (A, H), dtype=jnp.float32) * 0.02
    b_up = jax.random.normal(k_bu, (H,), dtype=jnp.float32) * 0.02

    # Hoisted weight preparation (done once), then the fused kernel.
    params = prepare_adapter_params(w_down, b_down, w_up, b_up,
                                    dtype=hidden_states.dtype)
    out = deberta_adapter_prepared(hidden_states, *params)
    out = jax.block_until_ready(out)

    ref = _reference(hidden_states, w_down, b_down, w_up, b_up)
    assert jnp.allclose(out, ref, atol=1e-5, rtol=1e-5), "mismatch vs reference"

    # Also exercise the ragged-last-block path (M not a multiple of the tile).
    hs2 = jax.random.normal(k_x, (1, 13, H), dtype=jnp.float32)
    out2 = jax.block_until_ready(
        deberta_adapter_prepared(hs2, *params, tile_m=8))
    ref2 = _reference(hs2, w_down, b_down, w_up, b_up)
    assert jnp.allclose(out2, ref2, atol=1e-5, rtol=1e-5), "ragged-M mismatch"

    print("KERNEL_OK")
</pallas_src>

<mosaic_0001>
module attributes {stable_mosaic.version = 11 : i64} {
  func.func @_adapter_kernel(%arg0: i32, %arg1: memref<16x32xf32, #tpu.memory_space<vmem>>, %arg2: memref<32x128xf32, #tpu.memory_space<vmem>>, %arg3: memref<1x128xf32, #tpu.memory_space<vmem>>, %arg4: memref<128x32xf32, #tpu.memory_space<vmem>>, %arg5: memref<1x32xf32, #tpu.memory_space<vmem>>, %arg6: memref<16x32xf32, #tpu.memory_space<vmem>>) attributes {dimension_semantics = [#tpu.dimension_semantics<parallel>], iteration_bounds = array<i64: 1>, scalar_prefetch = 0 : i64, scratch_operands = 0 : i64, tpu.core_type = #tpu.core_type<tc>, window_params = [{transform_indices = @transform_0, window_bounds = array<i64: 16, 32>}, {pipeline_mode = #tpu.pipeline_mode<synchronous>, transform_indices = @transform_1, window_bounds = array<i64: 32, 128>}, {pipeline_mode = #tpu.pipeline_mode<synchronous>, transform_indices = @transform_2, window_bounds = array<i64: 1, 128>}, {pipeline_mode = #tpu.pipeline_mode<synchronous>, transform_indices = @transform_3, window_bounds = array<i64: 128, 32>}, {pipeline_mode = #tpu.pipeline_mode<synchronous>, transform_indices = @transform_4, window_bounds = array<i64: 1, 32>}, {transform_indices = @transform_5, window_bounds = array<i64: 16, 32>}]} {
    %c0 = arith.constant 0 : index
    %c0_0 = arith.constant 0 : index
    %0 = vector.load %arg1[%c0, %c0_0] : memref<16x32xf32, #tpu.memory_space<vmem>>, vector<16x32xf32>
    %c0_1 = arith.constant 0 : index
    %c0_2 = arith.constant 0 : index
    %1 = vector.load %arg2[%c0_1, %c0_2] : memref<32x128xf32, #tpu.memory_space<vmem>>, vector<32x128xf32>
    %cst = arith.constant dense<0.000000e+00> : vector<16x128xf32>
    %2 = tpu.matmul %0, %1, %cst {dimension_numbers = #tpu.dot_dimension_numbers<[1], [0], [0], [1], [0, 0, 1, 1], [], []>} : vector<16x32xf32>, vector<32x128xf32>, vector<16x128xf32> -> vector<16x128xf32>
    %c0_3 = arith.constant 0 : index
    %c0_4 = arith.constant 0 : index
    %3 = vector.load %arg3[%c0_3, %c0_4] : memref<1x128xf32, #tpu.memory_space<vmem>>, vector<1x128xf32>
    %4 = vector.broadcast %3 : vector<1x128xf32> to vector<16x128xf32>
    %5 = arith.addf %2, %4 : vector<16x128xf32>
    %cst_5 = arith.constant 5.000000e-01 : f32
    %6 = vector.broadcast %cst_5 : f32 to vector<16x128xf32>
    %7 = arith.mulf %6, %5 : vector<16x128xf32>
    %cst_6 = arith.constant 0.707106769 : f32
    %8 = vector.broadcast %cst_6 : f32 to vector<16x128xf32>
    %9 = arith.mulf %5, %8 : vector<16x128xf32>
    %10 = math.erf %9 : vector<16x128xf32>
    %cst_7 = arith.constant 1.000000e+00 : f32
    %11 = vector.broadcast %cst_7 : f32 to vector<16x128xf32>
    %12 = arith.addf %11, %10 : vector<16x128xf32>
    %13 = arith.mulf %7, %12 : vector<16x128xf32>
    %c0_8 = arith.constant 0 : index
    %c0_9 = arith.constant 0 : index
    %14 = vector.load %arg4[%c0_8, %c0_9] : memref<128x32xf32, #tpu.memory_space<vmem>>, vector<128x32xf32>
    %cst_10 = arith.constant dense<0.000000e+00> : vector<16x32xf32>
    %15 = tpu.matmul %13, %14, %cst_10 {dimension_numbers = #tpu.dot_dimension_numbers<[1], [0], [0], [1], [0, 0, 1, 1], [], []>} : vector<16x128xf32>, vector<128x32xf32>, vector<16x32xf32> -> vector<16x32xf32>
    %c0_11 = arith.constant 0 : index
    %c0_12 = arith.constant 0 : index
    %16 = vector.load %arg5[%c0_11, %c0_12] : memref<1x32xf32, #tpu.memory_space<vmem>>, vector<1x32xf32>
    %17 = vector.broadcast %16 : vector<1x32xf32> to vector<16x32xf32>
    %18 = arith.addf %15, %17 : vector<16x32xf32>
    %19 = arith.addf %0, %18 : vector<16x32xf32>
    %c0_13 = arith.constant 0 : index
    %c0_14 = arith.constant 0 : index
    %20 = vector.load %arg6[%c0_13, %c0_14] : memref<16x32xf32, #tpu.memory_space<vmem>>, vector<16x32xf32>
    tpu.vector_store %arg6[%c0_13, %c0_14], %19 {strides = array<i32>} : memref<16x32xf32, #tpu.memory_space<vmem>>, vector<16x32xf32>,
    return
  }
  func.func @transform_0(%arg0: i32) -> (i32, i32) {
    %c0_i32 = arith.constant 0 : i32
    %c0_i32_0 = arith.constant 0 : i32
    return %arg0, %c0_i32 : i32, i32
  }
  func.func @transform_1(%arg0: i32) -> (i32, i32) {
    %c0_i32 = arith.constant 0 : i32
    %c0_i32_0 = arith.constant 0 : i32
    %c0_i32_1 = arith.constant 0 : i32
    return %c0_i32, %c0_i32_0 : i32, i32
  }
  func.func @transform_2(%arg0: i32) -> (i32, i32) {
    %c0_i32 = arith.constant 0 : i32
    %c0_i32_0 = arith.constant 0 : i32
    %c0_i32_1 = arith.constant 0 : i32
    return %c0_i32, %c0_i32_0 : i32, i32
  }
  func.func @transform_3(%arg0: i32) -> (i32, i32) {
    %c0_i32 = arith.constant 0 : i32
    %c0_i32_0 = arith.constant 0 : i32
    %c0_i32_1 = arith.constant 0 : i32
    return %c0_i32, %c0_i32_0 : i32, i32
  }
  func.func @transform_4(%arg0: i32) -> (i32, i32) {
    %c0_i32 = arith.constant 0 : i32
    %c0_i32_0 = arith.constant 0 : i32
    %c0_i32_1 = arith.constant 0 : i32
    return %c0_i32, %c0_i32_0 : i32, i32
  }
  func.func @transform_5(%arg0: i32) -> (i32, i32) {
    %c0_i32 = arith.constant 0 : i32
    %c0_i32_0 = arith.constant 0 : i32
    return %arg0, %c0_i32 : i32, i32
  }
}

</mosaic_0001>

<llo_original>
// kernel: tpu_custom_call.1
$region0: #{tpu_custom_call.1}
  #allocation0 [shape = 'u32[]', space=smem, size = 0x4, offset = 0x4, fixed_abs, tag = 'smem constant byte address 0x4 - core index']
  #allocation1 [shape = 'u32[144,128]{1,0:T(1,128)}', space=vmem, size = 0x12000, scoped, tag = 'internal scratch']
  %s0 = inlined_call_operand.vmem [shape: f32[16,32], index: 0, kind: input, shape index: {}]
  %s1 = inlined_call_operand.vmem [shape: f32[32,128], index: 1, kind: input, shape index: {}]
  %s2 = inlined_call_operand.vmem [shape: f32[1,128], index: 2, kind: input, shape index: {}]
  %s3 = inlined_call_operand.vmem [shape: f32[128,32], index: 3, kind: input, shape index: {}]
  %s4 = inlined_call_operand.vmem [shape: f32[1,32], index: 4, kind: input, shape index: {}]
  %s5 = inlined_call_operand.hbm [shape: f32[16,32], index: 5, kind: output, shape index: {}]
  %s6 = sld [smem:[#allocation0]]
  $region30: #{tpu_custom_call.1} parent=0
    _
  %s8 = ssub.s32 1, %s6
  %s9 = scalar_select 0, %s8, %s6
  $region1: #{tpu_custom_call.1} parent=0
    #allocation2 [shape = 'u8[8192]{0}', space=vmem, size = 0x2000, scoped, tag = 'output window, operand 0, single buffered']
    #allocation3 [shape = 's32[1]{0}', space=sflag, size = 0x4, scoped, tag = 'scoped memory for tpu_custom_call.1']
    %10 = vsyncpa [#allocation3], 0
    // Predicated region
    $region2: #{tpu_custom_call.1} parent=1 // pred_check
      _
    $region3: #{tpu_custom_call.1} parent=1 // pred_check_branch
      %12 = sbr.rel (0) target = $region5
    $region4: #{tpu_custom_call.1} parent=1 // pred_region
      _
    $region5: #{tpu_custom_call.1} parent=1 // pred_fallthru
      _
    // Predicated region
    $region6: #{tpu_custom_call.1} parent=1 // pred_check
      _
    $region7: #{tpu_custom_call.1} parent=1 // pred_check_branch
      %14 = sbr.rel (0) target = $region9
    $region8: #{tpu_custom_call.1} parent=1 // pred_region
      _
    $region9: #{tpu_custom_call.1} parent=1 // pred_fallthru
      _
    // Predicated region
    $region10: #{tpu_custom_call.1} parent=1 // pred_check
      _
    $region11: #{tpu_custom_call.1} parent=1 // pred_check_branch
      %16 = sbr.rel (0) target = $region13
    $region12: #{tpu_custom_call.1} parent=1 // pred_region
      _
    $region13: #{tpu_custom_call.1} parent=1 // pred_fallthru
      _
    // Predicated region
    $region14: #{tpu_custom_call.1} parent=1 // pred_check
      _
    $region15: #{tpu_custom_call.1} parent=1 // pred_check_branch
      %18 = sbr.rel (0) target = $region17
    $region16: #{tpu_custom_call.1} parent=1 // pred_region
      _
    $region17: #{tpu_custom_call.1} parent=1 // pred_fallthru
      _
    // Predicated region
    $region18: #{tpu_custom_call.1} parent=1 // pred_check
      _
    $region19: #{tpu_custom_call.1} parent=1 // pred_check_branch
      %20 = sbr.rel (0) target = $region21
    $region20: #{tpu_custom_call.1} parent=1 // pred_region
      _
    $region21: #{tpu_custom_call.1} parent=1 // pred_fallthru
      _
    %v21 = vld [vmem:[%s0] sm:$0xff]
    %v22 = vld [vmem:[%s0 + $0x8] sm:$0xff]
    %v23 = vld [vmem:[%s1] sm:$0xff]
    %v24 = vld [vmem:[%s1 + $0x8] sm:$0xff]
    %v25 = vld [vmem:[%s1 + $0x10] sm:$0xff]
    %v26 = vld [vmem:[%s1 + $0x18] sm:$0xff]
    %v27 = vld [vmem:[%s2] sm:$0x1]
    %v29 = vlaneseq
    %v30 = vshrl.u32 %v29, 7
    %v31 = vsub.s32 0, %v30
    %v32 = vrot.slane %v27, %v31
    %vm34 = vcmask 261120
    %v36 = vsel %vm34, %v21, 0
    %v39 = vsel %vm34, %v22, 0
    %41 = vmatprep.subr.mxu0 0.0
    %42 = vmatpush1.msra.mxu0 %v23
    %43 = vmatprep.subr.mxu0 0.0
    %44 = vmatpush1.msra.mxu0 %v24
    %45 = vmatprep.subr.mxu0 0.0
    %46 = vmatpush1.msra.mxu0 %v25
    %47 = vmatprep.subr.mxu0 0.0
    %48 = vmatpush1.msra.mxu0 %v26
    %49 = vmatprep.subr.mxu0 0.0
    %50 = vmatpush1.msra.mxu0 0.0
    %51 = vmatprep.subr.mxu0 0.0
    %52 = vmatpush1.msra.mxu0 0.0
    %53 = vmatprep.subr.mxu0 0.0
    %54 = vmatpush1.msra.mxu0 0.0
    %55 = vmatprep.subr.mxu0 0.0
    %56 = vmatpush1.msra.mxu0 0.0
    %57 = vmatprep.subr.mxu0 0.0
    %58 = vmatpush1.msra.mxu0 0.0
    %59 = vmatprep.subr.mxu0 0.0
    %60 = vmatpush1.msra.mxu0 0.0
    %61 = vmatprep.subr.mxu0 0.0
    %62 = vmatpush1.msra.mxu0 0.0
    %63 = vmatprep.subr.mxu0 0.0
    %64 = vmatpush1.msra.mxu0 0.0
    %65 = vmatprep.subr.mxu0 0.0
    %66 = vmatpush1.msra.mxu0 0.0
    %67 = vmatprep.subr.mxu0 0.0
    %68 = vmatpush1.msra.mxu0 0.0
    %69 = vmatprep.subr.mxu0 0.0
    %70 = vmatpush1.msra.mxu0 0.0
    %71 = vmatprep.subr.mxu0 0.0
    %72 = vmatpush1.msra.mxu0 0.0
    %73 = vmatprep.subr.mxu0 0.0
    %74 = vmatpush1.msra.mxu0 0.0
    %75 = vmatprep.subr.mxu0 0.0
    %76 = vmatpush1.msra.mxu0 0.0
    %77 = vmatprep.subr.mxu0 0.0
    %78 = vmatpush1.msra.mxu0 0.0
    %79 = vmatprep.subr.mxu0 0.0
    %80 = vmatpush1.msra.mxu0 0.0
    %81 = vmatprep.subr.mxu0 0.0
    %82 = vmatpush1.msra.mxu0 0.0
    %83 = vmatprep.subr.mxu0 0.0
    %84 = vmatpush1.msra.mxu0 0.0
    %85 = vmatprep.subr.mxu0 0.0
    %86 = vmatpush1.msra.mxu0 0.0
    %87 = vmatprep.subr.mxu0 0.0
    %88 = vmatpush1.msra.mxu0 0.0
    %89 = vmatprep.subr.mxu0 0.0
    %90 = vmatpush1.msra.mxu0 0.0
    %91 = vmatprep.subr.mxu0 0.0
    %92 = vmatpush1.msra.mxu0 0.0
    %93 = vmatprep.subr.mxu0 0.0
    %94 = vmatpush1.msra.mxu0 0.0
    %95 = vmatprep.subr.mxu0 0.0
    %96 = vmatpush1.msra.mxu0 0.0
    %97 = vmatprep.subr.mxu0 0.0
    %98 = vmatpush1.msra.mxu0 0.0
    %99 = vmatprep.subr.mxu0 0.0
    %100 = vmatpush1.msra.mxu0 0.0
    %101 = vmatprep.subr.mxu0 0.0
    %102 = vmatpush1.msra.mxu0 0.0
    %103 = vmatprep.subr.mxu0 0.0
    %104 = vmatpush1.msra.mxu0 0.0
    %105 = vmatprep.mubr.f32.mxu0 0.0
    %106 = vmatmul.mubr.f32.gmra.mrb[0].mxu0 %v36
    %v107 = vpop.f32.mrb[0].mxu0
    %v108 = vadd.f32 %v32, %v107
    %v109 = vpop.f32.mrb[0].mxu0
    %110 = vmatprep.mubr.f32.mxu0 0.0
    %111 = vmatmul.mubr.f32.gmra.mrb[0].mxu0 %v39
    %v112 = vpop.f32.mrb[0].mxu0
    %v113 = vadd.f32 %v32, %v112
    %v114 = vpop.f32.mrb[0].mxu0
    %115 = vdwg.mxu0
    %v116 = vmul.f32 %v108, 0.5
    %v117 = vmul.f32 %v113, 0.5
    %v118 = vmul.f32 %v108, 0.70710677
    %v119 = vmul.f32 %v113, 0.70710677
    %v120 = verf.f32.pop %v118
    %v121 = verf.f32.pop %v119
    %v122 = vadd.f32 %v120, 1.0
    %v123 = vadd.f32 %v121, 1.0
    %v124 = vmul.f32 %v116, %v122
    %v125 = vmul.f32 %v117, %v123
    %v126 = vld [vmem:[%s3] sm:$0xff]
    %v127 = vld [vmem:[%s3 + $0x8] sm:$0xff]
    %v128 = vld [vmem:[%s3 + $0x10] sm:$0xff]
    %v129 = vld [vmem:[%s3 + $0x18] sm:$0xff]
    %v130 = vld [vmem:[%s3 + $0x20] sm:$0xff]
    %v131 = vld [vmem:[%s3 + $0x28] sm:$0xff]
    %v132 = vld [vmem:[%s3 + $0x30] sm:$0xff]
    %v133 = vld [vmem:[%s3 + $0x38] sm:$0xff]
    %v134 = vld [vmem:[%s3 + $0x40] sm:$0xff]
    %v135 = vld [vmem:[%s3 + $0x48] sm:$0xff]
    %v136 = vld [vmem:[%s3 + $0x50] sm:$0xff]
    %v137 = vld [vmem:[%s3 + $0x58] sm:$0xff]
    %v138 = vld [vmem:[%s3 + $0x60] sm:$0xff]
    %v139 = vld [vmem:[%s3 + $0x68] sm:$0xff]
    %v140 = vld [vmem:[%s3 + $0x70] sm:$0xff]
    %v141 = vld [vmem:[%s3 + $0x78] sm:$0xff]
    %v142 = vld [vmem:[%s4] sm:$0x1]
    %v144 = vlaneseq
    %v145 = vshrl.u32 %v144, 7
    %v146 = vsub.s32 0, %v145
    %v147 = vrot.slane %v142, %v146
    %149 = vmatprep.subr.mxu0 0.0
    %150 = vmatpush1.msra.mxu0 %v126
    %151 = vmatprep.subr.mxu0 0.0
    %152 = vmatpush1.msra.mxu0 %v127
    %153 = vmatprep.subr.mxu0 0.0
    %154 = vmatpush1.msra.mxu0 %v128
    %155 = vmatprep.subr.mxu0 0.0
    %156 = vmatpush1.msra.mxu0 %v129
    %157 = vmatprep.subr.mxu0 0.0
    %158 = vmatpush1.msra.mxu0 %v130
    %159 = vmatprep.subr.mxu0 0.0
    %160 = vmatpush1.msra.mxu0 %v131
    %161 = vmatprep.subr.mxu0 0.0
    %162 = vmatpush1.msra.mxu0 %v132
    %163 = vmatprep.subr.mxu0 0.0
    %164 = vmatpush1.msra.mxu0 %v133
    %165 = vmatprep.subr.mxu0 0.0
    %166 = vmatpush1.msra.mxu0 %v134
    %167 = vmatprep.subr.mxu0 0.0
    %168 = vmatpush1.msra.mxu0 %v135
    %169 = vmatprep.subr.mxu0 0.0
    %170 = vmatpush1.msra.mxu0 %v136
    %171 = vmatprep.subr.mxu0 0.0
    %172 = vmatpush1.msra.mxu0 %v137
    %173 = vmatprep.subr.mxu0 0.0
    %174 = vmatpush1.msra.mxu0 %v138
    %175 = vmatprep.subr.mxu0 0.0
    %176 = vmatpush1.msra.mxu0 %v139
    %177 = vmatprep.subr.mxu0 0.0
    %178 = vmatpush1.msra.mxu0 %v140
    %179 = vmatprep.subr.mxu0 0.0
    %180 = vmatpush1.msra.mxu0 %v141
    %181 = vmatprep.subr.mxu0 0.0
    %182 = vmatpush1.msra.mxu0 0.0
    %183 = vmatprep.subr.mxu0 0.0
    %184 = vmatpush1.msra.mxu0 0.0
    %185 = vmatprep.subr.mxu0 0.0
    %186 = vmatpush1.msra.mxu0 0.0
    %187 = vmatprep.subr.mxu0 0.0
    %188 = vmatpush1.msra.mxu0 0.0
    %189 = vmatprep.subr.mxu0 0.0
    %190 = vmatpush1.msra.mxu0 0.0
    %191 = vmatprep.subr.mxu0 0.0
    %192 = vmatpush1.msra.mxu0 0.0
    %193 = vmatprep.subr.mxu0 0.0
    %194 = vmatpush1.msra.mxu0 0.0
    %195 = vmatprep.subr.mxu0 0.0
    %196 = vmatpush1.msra.mxu0 0.0
    %197 = vmatprep.subr.mxu0 0.0
    %198 = vmatpush1.msra.mxu0 0.0
    %199 = vmatprep.subr.mxu0 0.0
    %200 = vmatpush1.msra.mxu0 0.0
    %201 = vmatprep.subr.mxu0 0.0
    %202 = vmatpush1.msra.mxu0 0.0
    %203 = vmatprep.subr.mxu0 0.0
    %204 = vmatpush1.msra.mxu0 0.0
    %205 = vmatprep.subr.mxu0 0.0
    %206 = vmatpush1.msra.mxu0 0.0
    %207 = vmatprep.subr.mxu0 0.0
    %208 = vmatpush1.msra.mxu0 0.0
    %209 = vmatprep.subr.mxu0 0.0
    %210 = vmatpush1.msra.mxu0 0.0
    %211 = vmatprep.subr.mxu0 0.0
    %212 = vmatpush1.msra.mxu0 0.0
    %213 = vmatprep.mubr.f32.mxu0 0.0
    %214 = vmatmul.mubr.f32.gmra.mrb[0].mxu0 %v124
    %v215 = vpop.f32.mrb[0].mxu0
    %v216 = vadd.f32 %v147, %v215
    %v217 = vpop.f32.mrb[0].mxu0
    %218 = vmatprep.mubr.f32.mxu0 0.0
    %219 = vmatmul.mubr.f32.gmra.mrb[0].mxu0 %v125
    %v220 = vpop.f32.mrb[0].mxu0
    %v221 = vadd.f32 %v147, %v220
    %v222 = vpop.f32.mrb[0].mxu0
    %223 = vdwg.mxu0
    %v224 = vadd.f32 %v21, %v216
    %v225 = vadd.f32 %v22, %v221
    %226 = vst.msk [vmem:[#allocation2] sm:$0xff] %vm34, %v224
    %227 = vst.msk [vmem:[#allocation2 + $0x8] sm:$0xff] %vm34, %v225
    // Predicated region
    $region22: #{tpu_custom_call.1} parent=1 // pred_check
      _
    $region23: #{tpu_custom_call.1} parent=1 // pred_check_branch
      %229 = sbr.rel (0) target = $region25
    $region24: #{tpu_custom_call.1} parent=1 // pred_region
      %s231 = ssub.s32 256, 256
      %232 = vsyncadd [#allocation3], %s231
      %s233 = sshll.u32 [#allocation2], 4
      %s234 = int_to_ptr.vmem [resolvable:$true] %s233
      %239 = dma.vmem_to_hbm [thread:$0]  %s234, 256, %s5, [#allocation3], 128, 128, 8
    $region25: #{tpu_custom_call.1} parent=1 // pred_fallthru
      _
    // Predicated region
    $region26: #{tpu_custom_call.1} parent=1 // pred_check
      _
    $region27: #{tpu_custom_call.1} parent=1 // pred_check_branch
      %241 = sbr.rel (0) target = $region29
    $region28: #{tpu_custom_call.1} parent=1 // pred_region
      %242 = dma.done [#allocation3], 256
    $region29: #{tpu_custom_call.1} parent=1 // pred_fallthru
      _
    %243 = vsyncpa [#allocation3], 1

</llo_original>
